<compile_context>
chip_gen: v5e
topology: v5e:2x2
jax: 0.10.0
libtpu: 0.0.40
codegen_flags: <defaults>
</compile_context>

<pallas_src>
import math

import jax
import jax.numpy as jnp
from jax import lax
from jax.experimental import pallas as pl
from jax.experimental.pallas import tpu as pltpu


def _pow_static(x, e):
    """x ** e for a static Python exponent; stays on the VPU for integer e."""
    ef = float(e)
    if ef.is_integer():
        ei = int(ef)
        if ei >= 0:
            return lax.integer_pow(x, ei)
        return 1.0 / lax.integer_pow(x, -ei)
    return jnp.power(x, ef)


def _round_up(a, m):
    return ((a + m - 1) // m) * m


def _cdiv(a, b):
    return -(-a // b)


def _vmem_capacity_bytes():
    try:
        cap = int(getattr(pltpu.get_tpu_info(), "vmem_capacity_bytes", 0))
        if cap > 0:
            return cap
    except Exception:
        pass
    return 64 << 20  # conservative (v7x-sized) fallback


def _num_tensorcores():
    """Best-effort TensorCores-per-chip: 2 only on v7x / megacore chips."""
    try:
        kind = jax.devices()[0].device_kind.lower()
    except Exception:
        return 1
    if "v7" in kind or "7x" in kind:
        return 2
    if "lite" in kind or "v5e" in kind or "v6" in kind:
        return 1
    if "v4" in kind or "v5p" in kind:
        return 2   # megacore
    return 1


def _select_tiling(batch, x_itemsize, y_itemsize, nr, num_cores):
    """Pick (rows_per_block, nj, core_splits, vmem_limit)."""
    vmem_limit = min(_vmem_capacity_bytes() // 2, 64 << 20)
    # Bytes per row-of-128: 2 logit planes + 1 label plane, double-buffered by the
    # pipeline, plus ~8 live f32 block temporaries inside the body.
    per_row = batch * 128 * ((2 * x_itemsize + y_itemsize) * 2 + 8 * 4)
    r_cap = (vmem_limit * 3 // 5) // max(per_row, 1)
    # Cap at 512: measured bandwidth plateaus there and it keeps v7x VMEM headroom.
    r_cap = max(32, min(r_cap - r_cap % 32, 512))

    if nr <= r_cap and (num_cores == 1 or nr < 64):
        return nr, 1, 1, vmem_limit                      # single full-extent block

    rows = min(r_cap, _round_up(_cdiv(nr, num_cores), 32))
    total_blocks = _cdiv(nr, rows)
    cs = min(num_cores, total_blocks)
    nj = _cdiv(total_blocks, cs)
    return rows, nj, cs, vmem_limit


def _make_kernel(rows, nj, n_valid, n_cover, delta, gamma, eps):
    f32 = jnp.float32
    exact = (n_cover == n_valid)   # grid coverage equals real element count -> no mask

    def kernel(x_ref, y_ref, out_ref):
        c = pl.program_id(0)   # core split ("parallel")
        j = pl.program_id(1)   # feature sweep ("arbitrary" reduction axis)

        @pl.when(j == 0)
        def _init():
            out_ref[...] = jnp.zeros_like(out_ref)

        x0 = x_ref[:, 0, :, :].astype(f32)   # background logits (B, R, 128)
        x1 = x_ref[:, 1, :, :].astype(f32)   # foreground logits (B, R, 128)
        yf = y_ref[...].astype(f32)          # labels 0/1        (B, R, 128)

        def accumulate(valid):
            # 2-class softmax == sigmoid(x1 - x0): one tanh on the EUP, no exp,
            # no divide.  Then clamp to [eps, 1-eps] like the reference.
            d = x1 - x0
            if valid is not None:
                d = jnp.where(valid, d, 0.0)     # keep stale VMEM out of tanh/log
            p1 = jnp.clip(0.5 * (1.0 + jnp.tanh(0.5 * d)), eps, 1.0 - eps)
            p0 = 1.0 - p1
            if valid is None:
                m1 = yf
                m0 = 1.0 - yf
            else:
                m1 = jnp.where(valid, yf, 0.0)
                m0 = valid.astype(f32) - m1
            # Asymmetric focal CE: only the true-class log-prob is needed.
            log_sel = jnp.log(jnp.where(yf > 0.5, p1, p0))
            w_back = (1.0 - delta) * _pow_static(p1, gamma)   # (1 - p0) == p1
            foc = -log_sel * (w_back * m0 + delta * m1)
            # Lane-resident accumulation: reduce only the sublane (row) axis here;
            # the single cross-lane reduce + O(B) finalization happen outside.
            out_ref[0] += jnp.sum(m1, axis=1)        # Σ foreground mask
            out_ref[1] += jnp.sum(m0 * p0, axis=1)   # Σ tp (class 0)
            out_ref[2] += jnp.sum(m1 * p1, axis=1)   # Σ tp (class 1)
            out_ref[3] += jnp.sum(foc, axis=1)       # Σ focal cross-entropy

        if exact:
            accumulate(None)
        else:
            ub = c * nj + j                      # unclamped logical block index
            base = ub * (rows * 128)
            needs_mask = base + rows * 128 > n_valid

            @pl.when(jnp.logical_not(needs_mask))
            def _interior():                     # fast path: no per-element mask
                accumulate(None)

            @pl.when(needs_mask)
            def _tail():                         # only the ragged tail block(s)
                row = lax.broadcasted_iota(jnp.int32, (rows, 128), 0)
                lane = lax.broadcasted_iota(jnp.int32, (rows, 128), 1)
                valid = ((row * 128 + lane) < (n_valid - base))[None, :, :]
                accumulate(valid)

    return kernel


def unified_focal_loss(preds, targets, delta=0.9, gamma=3, *, core_splits=None):
    """Fused forward pass of UnifiedFocalLoss.

    preds:   (B, 2, *spatial) unnormalized logits (f32 or bf16 — bf16 halves the
             dominant HBM read stream; math is done in f32 in-kernel).
    targets: (B, 1, *spatial) class labels in {0, 1} (any int/float dtype; streamed
             as-is, no host-side conversion copy).
    Returns (focal_loss, tversky_loss), matching the PyTorch module.
    """
    assert preds.ndim in (4, 5) and targets.ndim == preds.ndim
    assert preds.shape[0] == targets.shape[0], "batch sizes don't match"
    assert preds.shape[1] == 2, "binary segmentation expected: 2 logit channels"
    assert targets.shape[1] == 1
    # TODO(synk): multi-class (>2 channels) softmax is not supported; the reference
    # module is written for binary segmentation only.

    b = preds.shape[0]
    n = math.prod(preds.shape[2:])
    eps = float(jnp.finfo(preds.dtype).eps)   # matches torch.finfo(y_pred.dtype).eps

    if targets.dtype == jnp.bool_:
        targets = targets.astype(jnp.int32)

    x = preds.reshape(b, 2, n)
    y = targets.reshape(b, n)                 # labels streamed in original dtype

    # Pad (a full-tensor copy) only if the spatial size is not lane-aligned; the
    # ragged tail past `n` is otherwise handled by the in-kernel mask.
    n_pad = _round_up(n, 128)
    if n_pad != n:
        x = jnp.pad(x, ((0, 0), (0, 0), (0, n_pad - n)))
        y = jnp.pad(y, ((0, 0), (0, n_pad - n)))
    nr = n_pad // 128
    x = x.reshape(b, 2, nr, 128)
    y = y.reshape(b, nr, 128)

    num_cores = _num_tensorcores() if core_splits is None else max(1, int(core_splits))
    rows, nj, cs, vmem_limit = _select_tiling(
        b, jnp.dtype(preds.dtype).itemsize, jnp.dtype(y.dtype).itemsize, nr, num_cores)
    total_blocks = _cdiv(nr, rows)
    n_cover = cs * nj * rows * 128

    if cs * nj == total_blocks:
        blk = lambda c, j: c * nj + j
    else:
        # Duplicate (beyond-the-end) grid steps re-read the last real block; their
        # contribution is zeroed by the in-kernel mask (computed from the
        # *unclamped* block index).
        blk = lambda c, j: jnp.minimum(c * nj + j, total_blocks - 1)

    kernel = _make_kernel(rows, nj, n, n_cover, float(delta), gamma, eps)

    out = pl.pallas_call(
        kernel,
        out_shape=jax.ShapeDtypeStruct((cs * 4, b, 128), jnp.float32),
        grid_spec=pltpu.PrefetchScalarGridSpec(
            num_scalar_prefetch=0,
            grid=(cs, nj),
            in_specs=[
                pl.BlockSpec((b, 2, rows, 128), lambda c, j: (0, 0, blk(c, j), 0)),
                pl.BlockSpec((b, rows, 128), lambda c, j: (0, blk(c, j), 0)),
            ],
            out_specs=pl.BlockSpec((4, b, 128), lambda c, j: (c, 0, 0)),
        ),
        compiler_params=pltpu.CompilerParams(
            dimension_semantics=("parallel", "arbitrary"),
            vmem_limit_bytes=vmem_limit,
        ),
    )(x, y)

    # Tiny O(B) finalization in plain JAX.
    s = jnp.sum(out.reshape(cs, 4, b, 128), axis=(0, 3))   # (4, B)
    s_m1, s_tp0, s_tp1, s_foc = (s[i] for i in range(4))
    s_m0 = float(n) - s_m1
    # Because p0 = 1 - p1:  fn0 = fp1 = Σm0 - tp0   and   fn1 = fp0 = Σm1 - tp1.
    fn0 = s_m0 - s_tp0
    fn1 = s_m1 - s_tp1
    dice0 = (s_tp0 + eps) / (s_tp0 + delta * fn1 + (1.0 - delta) * fn0 + eps)
    dice1 = (s_tp1 + eps) / (s_tp1 + delta * fn0 + (1.0 - delta) * fn1 + eps)
    back_dice = 1.0 - dice0
    # NOTE: (1 - dice1) ** (1 - gamma) has a negative exponent for gamma > 1 and
    # can overflow to inf when there are no foreground pixels — same as PyTorch.
    fore_dice = _pow_static(1.0 - dice1, 1.0 - float(gamma))
    tversky = jnp.mean(jnp.stack([back_dice, fore_dice], axis=-1))
    focal = jnp.sum(s_foc) / (b * n)
    return focal, tversky


def _reference(preds, targets, delta=0.9, gamma=3):
    """Pure-JAX mirror of the PyTorch UnifiedFocalLoss forward."""
    preds = preds.astype(jnp.float32)
    eps = float(jnp.finfo(jnp.float32).eps)
    p = jax.nn.softmax(preds, axis=1)
    p = jnp.clip(p, eps, 1.0 - eps)
    logp = jnp.log(p)
    y = jnp.squeeze(targets, axis=1).astype(jnp.int32)
    mask = jax.nn.one_hot(y, 2, axis=1, dtype=jnp.float32)   # (B, 2, H, W)
    ce = -mask * logp
    back_ce = (1.0 - delta) * _pow_static(1.0 - p[:, 0], gamma) * ce[:, 0]
    fore_ce = delta * ce[:, 1]
    fl = jnp.mean(back_ce + fore_ce)

    axes = tuple(range(2, preds.ndim))
    tp = jnp.sum(mask * p, axis=axes)
    fn = jnp.sum(mask * (1.0 - p), axis=axes)
    fp = jnp.sum((1.0 - mask) * p, axis=axes)
    dice = (tp + eps) / (tp + delta * fp + (1.0 - delta) * fn + eps)
    back_dice = 1.0 - dice[:, 0]
    fore_dice = _pow_static(1.0 - dice[:, 1], 1.0 - float(gamma))
    tl = jnp.mean(jnp.stack([back_dice, fore_dice], axis=-1))
    return fl, tl


if __name__ == "__main__":
    key = jax.random.PRNGKey(0)
    k1, k2, k3, k4 = jax.random.split(key, 4)

    # Case 1: lane-aligned spatial size (no host padding, no in-kernel mask).
    b, c, h, w = 2, 2, 16, 16
    preds = jax.random.normal(k1, (b, c, h, w), dtype=jnp.float32)
    targets = (jax.random.uniform(k2, (b, 1, h, w)) > 0.5).astype(jnp.int32)
    fl, tl = unified_focal_loss(preds, targets, delta=0.9, gamma=3)
    fl, tl = jax.block_until_ready((fl, tl))
    fl_ref, tl_ref = _reference(preds, targets, delta=0.9, gamma=3)
    assert jnp.allclose(fl, fl_ref, atol=1e-5, rtol=5e-5), (fl, fl_ref)
    assert jnp.allclose(tl, tl_ref, atol=1e-5, rtol=5e-5), (tl, tl_ref)

    # Case 2: non-lane-aligned spatial size (exercises the ragged-tail mask path).
    h2, w2 = 9, 21
    preds2 = jax.random.normal(k3, (b, c, h2, w2), dtype=jnp.float32)
    targets2 = (jax.random.uniform(k4, (b, 1, h2, w2)) > 0.5).astype(jnp.int32)
    fl2, tl2 = unified_focal_loss(preds2, targets2, delta=0.9, gamma=3)
    fl2, tl2 = jax.block_until_ready((fl2, tl2))
    fl2_ref, tl2_ref = _reference(preds2, targets2, delta=0.9, gamma=3)
    assert jnp.allclose(fl2, fl2_ref, atol=1e-5, rtol=5e-5), (fl2, fl2_ref)
    assert jnp.allclose(tl2, tl2_ref, atol=1e-5, rtol=5e-5), (tl2, tl2_ref)

    print("KERNEL_OK")
</pallas_src>

<mosaic_0001>
module attributes {stable_mosaic.version = 11 : i64} {
  func.func @kernel(%arg0: i32, %arg1: i32, %arg2: memref<2x2x2x128xf32, #tpu.memory_space<vmem>>, %arg3: memref<2x2x128xi32, #tpu.memory_space<vmem>>, %arg4: memref<4x2x128xf32, #tpu.memory_space<vmem>>) attributes {dimension_semantics = [#tpu.dimension_semantics<parallel>, #tpu.dimension_semantics<arbitrary>], iteration_bounds = array<i64: 1, 1>, scalar_prefetch = 0 : i64, scratch_operands = 0 : i64, tpu.core_type = #tpu.core_type<tc>, window_params = [{transform_indices = @transform_0, window_bounds = array<i64: 2, 2, 2, 128>}, {transform_indices = @transform_1, window_bounds = array<i64: 2, 2, 128>}, {transform_indices = @transform_2, window_bounds = array<i64: 4, 2, 128>}]} {
    %c0_i32 = arith.constant 0 : i32
    %0 = arith.cmpi eq, %arg1, %c0_i32 : i32
    %1 = arith.extui %0 : i1 to i32
    %c0_i32_0 = arith.constant 0 : i32
    %2 = arith.cmpi ne, %1, %c0_i32_0 : i32
    scf.if %2 {
      %cst_46 = arith.constant 0.000000e+00 : f32
      %70 = vector.broadcast %cst_46 : f32 to vector<4x2x128xf32>
      %c0_47 = arith.constant 0 : index
      %c0_48 = arith.constant 0 : index
      %c0_49 = arith.constant 0 : index
      %71 = vector.load %arg4[%c0_47, %c0_48, %c0_49] : memref<4x2x128xf32, #tpu.memory_space<vmem>>, vector<4x2x128xf32>
      tpu.vector_store %arg4[%c0_47, %c0_48, %c0_49], %70 {strides = array<i32>} : memref<4x2x128xf32, #tpu.memory_space<vmem>>, vector<4x2x128xf32>,
    } else {
    }
    %c0 = arith.constant 0 : index
    %c0_1 = arith.constant 0 : index
    %c0_2 = arith.constant 0 : index
    %c0_3 = arith.constant 0 : index
    %3 = vector.load %arg2[%c0, %c0_1, %c0_2, %c0_3] : memref<2x2x2x128xf32, #tpu.memory_space<vmem>>, vector<2x1x2x128xf32>
    %4 = vector.shape_cast %3 : vector<2x1x2x128xf32> to vector<2x2x128xf32>
    %c0_4 = arith.constant 0 : index
    %c1 = arith.constant 1 : index
    %c0_5 = arith.constant 0 : index
    %c0_6 = arith.constant 0 : index
    %5 = vector.load %arg2[%c0_4, %c1, %c0_5, %c0_6] : memref<2x2x2x128xf32, #tpu.memory_space<vmem>>, vector<2x1x2x128xf32>
    %6 = vector.shape_cast %5 : vector<2x1x2x128xf32> to vector<2x2x128xf32>
    %c0_7 = arith.constant 0 : index
    %c0_8 = arith.constant 0 : index
    %c0_9 = arith.constant 0 : index
    %7 = vector.load %arg3[%c0_7, %c0_8, %c0_9] : memref<2x2x128xi32, #tpu.memory_space<vmem>>, vector<2x2x128xi32>
    %8 = arith.sitofp %7 : vector<2x2x128xi32> to vector<2x2x128xf32>
    %9 = arith.subf %6, %4 : vector<2x2x128xf32>
    %cst = arith.constant 5.000000e-01 : f32
    %10 = vector.broadcast %cst : f32 to vector<2x2x128xf32>
    %11 = arith.mulf %10, %9 : vector<2x2x128xf32>
    %12 = math.tanh %11 : vector<2x2x128xf32>
    %cst_10 = arith.constant 1.000000e+00 : f32
    %13 = vector.broadcast %cst_10 : f32 to vector<2x2x128xf32>
    %14 = arith.addf %13, %12 : vector<2x2x128xf32>
    %cst_11 = arith.constant 5.000000e-01 : f32
    %15 = vector.broadcast %cst_11 : f32 to vector<2x2x128xf32>
    %16 = arith.mulf %15, %14 : vector<2x2x128xf32>
    %cst_12 = arith.constant 1.1920929E-7 : f32
    %cst_13 = arith.constant 0.99999988 : f32
    %17 = vector.broadcast %cst_12 : f32 to vector<2x2x128xf32>
    %18 = arith.maximumf %17, %16 : vector<2x2x128xf32>
    %19 = vector.broadcast %cst_13 : f32 to vector<2x2x128xf32>
    %20 = arith.minimumf %19, %18 : vector<2x2x128xf32>
    %cst_14 = arith.constant 1.000000e+00 : f32
    %21 = vector.broadcast %cst_14 : f32 to vector<2x2x128xf32>
    %22 = arith.subf %21, %20 : vector<2x2x128xf32>
    %cst_15 = arith.constant 1.000000e+00 : f32
    %23 = vector.broadcast %cst_15 : f32 to vector<2x2x128xf32>
    %24 = arith.subf %23, %8 : vector<2x2x128xf32>
    %cst_16 = arith.constant 5.000000e-01 : f32
    %25 = vector.broadcast %cst_16 : f32 to vector<2x2x128xf32>
    %26 = arith.cmpf ogt, %8, %25 : vector<2x2x128xf32>
    %27 = arith.select %26, %20, %22 : vector<2x2x128xi1>, vector<2x2x128xf32>
    %28 = math.log %27 : vector<2x2x128xf32>
    %29 = arith.mulf %20, %20 : vector<2x2x128xf32>
    %30 = arith.mulf %20, %29 : vector<2x2x128xf32>
    %cst_17 = arith.constant 1.000000e-01 : f32
    %31 = vector.broadcast %cst_17 : f32 to vector<2x2x128xf32>
    %32 = arith.mulf %31, %30 : vector<2x2x128xf32>
    %cst_18 = arith.constant 0.000000e+00 : f32
    %33 = vector.broadcast %cst_18 : f32 to vector<2x2x128xf32>
    %34 = arith.subf %33, %28 : vector<2x2x128xf32>
    %35 = arith.mulf %32, %24 : vector<2x2x128xf32>
    %cst_19 = arith.constant 0.899999976 : f32
    %36 = vector.broadcast %cst_19 : f32 to vector<2x2x128xf32>
    %37 = arith.mulf %36, %8 : vector<2x2x128xf32>
    %38 = arith.addf %35, %37 : vector<2x2x128xf32>
    %39 = arith.mulf %34, %38 : vector<2x2x128xf32>
    %c0_20 = arith.constant 0 : index
    %c0_21 = arith.constant 0 : index
    %c0_22 = arith.constant 0 : index
    %40 = vector.load %arg4[%c0_20, %c0_21, %c0_22] : memref<4x2x128xf32, #tpu.memory_space<vmem>>, vector<1x2x128xf32>
    %41 = vector.shape_cast %40 : vector<1x2x128xf32> to vector<2x128xf32>
    %cst_23 = arith.constant dense<0.000000e+00> : vector<2x128xf32>
    %42 = vector.multi_reduction <add>, %8, %cst_23 [1] : vector<2x2x128xf32> to vector<2x128xf32>
    %43 = arith.addf %41, %42 : vector<2x128xf32>
    %c0_24 = arith.constant 0 : index
    %c0_25 = arith.constant 0 : index
    %c0_26 = arith.constant 0 : index
    %44 = vector.load %arg4[%c0_24, %c0_25, %c0_26] : memref<4x2x128xf32, #tpu.memory_space<vmem>>, vector<1x2x128xf32>
    %45 = vector.shape_cast %44 : vector<1x2x128xf32> to vector<2x128xf32>
    %46 = vector.shape_cast %43 : vector<2x128xf32> to vector<1x2x128xf32>
    tpu.vector_store %arg4[%c0_24, %c0_25, %c0_26], %46 {strides = array<i32>} : memref<4x2x128xf32, #tpu.memory_space<vmem>>, vector<1x2x128xf32>,
    %c1_27 = arith.constant 1 : index
    %c0_28 = arith.constant 0 : index
    %c0_29 = arith.constant 0 : index
    %47 = vector.load %arg4[%c1_27, %c0_28, %c0_29] : memref<4x2x128xf32, #tpu.memory_space<vmem>>, vector<1x2x128xf32>
    %48 = vector.shape_cast %47 : vector<1x2x128xf32> to vector<2x128xf32>
    %49 = arith.mulf %24, %22 : vector<2x2x128xf32>
    %cst_30 = arith.constant dense<0.000000e+00> : vector<2x128xf32>
    %50 = vector.multi_reduction <add>, %49, %cst_30 [1] : vector<2x2x128xf32> to vector<2x128xf32>
    %51 = arith.addf %48, %50 : vector<2x128xf32>
    %c1_31 = arith.constant 1 : index
    %c0_32 = arith.constant 0 : index
    %c0_33 = arith.constant 0 : index
    %52 = vector.load %arg4[%c1_31, %c0_32, %c0_33] : memref<4x2x128xf32, #tpu.memory_space<vmem>>, vector<1x2x128xf32>
    %53 = vector.shape_cast %52 : vector<1x2x128xf32> to vector<2x128xf32>
    %54 = vector.shape_cast %51 : vector<2x128xf32> to vector<1x2x128xf32>
    tpu.vector_store %arg4[%c1_31, %c0_32, %c0_33], %54 {strides = array<i32>} : memref<4x2x128xf32, #tpu.memory_space<vmem>>, vector<1x2x128xf32>,
    %c2 = arith.constant 2 : index
    %c0_34 = arith.constant 0 : index
    %c0_35 = arith.constant 0 : index
    %55 = vector.load %arg4[%c2, %c0_34, %c0_35] : memref<4x2x128xf32, #tpu.memory_space<vmem>>, vector<1x2x128xf32>
    %56 = vector.shape_cast %55 : vector<1x2x128xf32> to vector<2x128xf32>
    %57 = arith.mulf %8, %20 : vector<2x2x128xf32>
    %cst_36 = arith.constant dense<0.000000e+00> : vector<2x128xf32>
    %58 = vector.multi_reduction <add>, %57, %cst_36 [1] : vector<2x2x128xf32> to vector<2x128xf32>
    %59 = arith.addf %56, %58 : vector<2x128xf32>
    %c2_37 = arith.constant 2 : index
    %c0_38 = arith.constant 0 : index
    %c0_39 = arith.constant 0 : index
    %60 = vector.load %arg4[%c2_37, %c0_38, %c0_39] : memref<4x2x128xf32, #tpu.memory_space<vmem>>, vector<1x2x128xf32>
    %61 = vector.shape_cast %60 : vector<1x2x128xf32> to vector<2x128xf32>
    %62 = vector.shape_cast %59 : vector<2x128xf32> to vector<1x2x128xf32>
    tpu.vector_store %arg4[%c2_37, %c0_38, %c0_39], %62 {strides = array<i32>} : memref<4x2x128xf32, #tpu.memory_space<vmem>>, vector<1x2x128xf32>,
    %c3 = arith.constant 3 : index
    %c0_40 = arith.constant 0 : index
    %c0_41 = arith.constant 0 : index
    %63 = vector.load %arg4[%c3, %c0_40, %c0_41] : memref<4x2x128xf32, #tpu.memory_space<vmem>>, vector<1x2x128xf32>
    %64 = vector.shape_cast %63 : vector<1x2x128xf32> to vector<2x128xf32>
    %cst_42 = arith.constant dense<0.000000e+00> : vector<2x128xf32>
    %65 = vector.multi_reduction <add>, %39, %cst_42 [1] : vector<2x2x128xf32> to vector<2x128xf32>
    %66 = arith.addf %64, %65 : vector<2x128xf32>
    %c3_43 = arith.constant 3 : index
    %c0_44 = arith.constant 0 : index
    %c0_45 = arith.constant 0 : index
    %67 = vector.load %arg4[%c3_43, %c0_44, %c0_45] : memref<4x2x128xf32, #tpu.memory_space<vmem>>, vector<1x2x128xf32>
    %68 = vector.shape_cast %67 : vector<1x2x128xf32> to vector<2x128xf32>
    %69 = vector.shape_cast %66 : vector<2x128xf32> to vector<1x2x128xf32>
    tpu.vector_store %arg4[%c3_43, %c0_44, %c0_45], %69 {strides = array<i32>} : memref<4x2x128xf32, #tpu.memory_space<vmem>>, vector<1x2x128xf32>,
    return
  }
  func.func @transform_0(%arg0: i32, %arg1: i32) -> (i32, i32, i32, i32) {
    %c1_i32 = arith.constant 1 : i32
    %0 = arith.muli %arg0, %c1_i32 : i32
    %1 = arith.addi %0, %arg1 : i32
    %c0_i32 = arith.constant 0 : i32
    %c0_i32_0 = arith.constant 0 : i32
    %c0_i32_1 = arith.constant 0 : i32
    %c0_i32_2 = arith.constant 0 : i32
    return %c0_i32, %c0_i32_0, %1, %c0_i32_1 : i32, i32, i32, i32
  }
  func.func @transform_1(%arg0: i32, %arg1: i32) -> (i32, i32, i32) {
    %c1_i32 = arith.constant 1 : i32
    %0 = arith.muli %arg0, %c1_i32 : i32
    %1 = arith.addi %0, %arg1 : i32
    %c0_i32 = arith.constant 0 : i32
    %c0_i32_0 = arith.constant 0 : i32
    %c0_i32_1 = arith.constant 0 : i32
    return %c0_i32, %1, %c0_i32_0 : i32, i32, i32
  }
  func.func @transform_2(%arg0: i32, %arg1: i32) -> (i32, i32, i32) {
    %c0_i32 = arith.constant 0 : i32
    %c0_i32_0 = arith.constant 0 : i32
    %c0_i32_1 = arith.constant 0 : i32
    return %arg0, %c0_i32, %c0_i32_0 : i32, i32, i32
  }
}

</mosaic_0001>

<llo_original>
// kernel: tpu_custom_call.1
$region0: #{tpu_custom_call.1}
  #allocation0 [shape = 'u32[]', space=smem, size = 0x4, offset = 0x4, fixed_abs, tag = 'smem constant byte address 0x4 - core index']
  #allocation1 [shape = 'u32[72,128]{1,0:T(1,128)}', space=vmem, size = 0x9000, scoped, tag = 'internal scratch']
  %s0 = inlined_call_operand.hbm [shape: f32[2,2,2,128], index: 0, kind: input, shape index: {}]
  %s1 = inlined_call_operand.hbm [shape: s32[2,2,128], index: 1, kind: input, shape index: {}]
  %s2 = inlined_call_operand.hbm [shape: f32[4,2,128], index: 2, kind: output, shape index: {}]
  %s3 = sld [smem:[#allocation0]]
  $region30: #{tpu_custom_call.1} parent=0
    _
  %s5 = ssub.s32 1, %s3
  %s6 = scalar_select 0, %s5, %s3
  $region1: #{tpu_custom_call.1} parent=0
    #allocation2 [shape = 'u8[4096]{0}', space=vmem, size = 0x1000, scoped, tag = 'input window, operand 0, single buffered']
    #allocation3 [shape = 's32[1]{0}', space=sflag, size = 0x4, scoped, tag = 'scoped memory for tpu_custom_call.1']
    #allocation4 [shape = 's32[1]{0}', space=sflag, size = 0x4, scoped, tag = 'scoped memory for tpu_custom_call.1']
    #allocation5 [shape = 'u8[2048]{0}', space=vmem, size = 0x800, scoped, tag = 'input window, operand 1, single buffered']
    #allocation6 [shape = 's32[1]{0}', space=sflag, size = 0x4, scoped, tag = 'scoped memory for tpu_custom_call.1']
    #allocation7 [shape = 'u8[4096]{0}', space=vmem, size = 0x1000, scoped, tag = 'output window, operand 0, single buffered']
    %7 = vsyncpa [#allocation3], 0
    %8 = vsyncpa [#allocation6], 0
    %9 = vsyncpa [#allocation4], 0
    // Predicated region
    $region2: #{tpu_custom_call.1} parent=1 // pred_check
      _
    $region3: #{tpu_custom_call.1} parent=1 // pred_check_branch
      %11 = sbr.rel (0) target = $region5
    $region4: #{tpu_custom_call.1} parent=1 // pred_region
      %s12 = sadd.s32 0, 0
      %14 = vsyncadd [#allocation3], 0
      %s15 = smul.addr %s12, 2
      %s16 = scalar_lea.hbm %s0, %s15
      %s17 = sshll.u32 %s16, 4
      %s18 = int_to_ptr.hbm [resolvable:$true] %s17
      %s19 = sshll.u32 [#allocation2], 4
      %s20 = int_to_ptr.vmem [resolvable:$true] %s19
      %25 = dma.hbm_to_vmem [thread:$0]  %s18, 128, %s20, [#allocation3], 32, 32, 2
    $region5: #{tpu_custom_call.1} parent=1 // pred_fallthru
      _
    // Predicated region
    $region6: #{tpu_custom_call.1} parent=1 // pred_check
      _
    $region7: #{tpu_custom_call.1} parent=1 // pred_check_branch
      %27 = sbr.rel (0) target = $region9
    $region8: #{tpu_custom_call.1} parent=1 // pred_region
      %s28 = sadd.s32 0, 0
      %30 = vsyncadd [#allocation6], 0
      %s31 = smul.addr %s28, 2
      %s32 = scalar_lea.hbm %s1, %s31
      %s33 = sshll.u32 %s32, 4
      %s34 = int_to_ptr.hbm [resolvable:$true] %s33
      %s35 = sshll.u32 [#allocation5], 4
      %s36 = int_to_ptr.vmem [resolvable:$true] %s35
      %41 = dma.hbm_to_vmem [thread:$0]  %s34, 64, %s36, [#allocation6], 32, 32, 2
    $region9: #{tpu_custom_call.1} parent=1 // pred_fallthru
      _
    // Predicated region
    $region10: #{tpu_custom_call.1} parent=1 // pred_check
      _
    $region11: #{tpu_custom_call.1} parent=1 // pred_check_branch
      %43 = sbr.rel (0) target = $region13
    $region12: #{tpu_custom_call.1} parent=1 // pred_region
      %45 = dma.done [#allocation3], 128
    $region13: #{tpu_custom_call.1} parent=1 // pred_fallthru
      _
    // Predicated region
    $region14: #{tpu_custom_call.1} parent=1 // pred_check
      _
    $region15: #{tpu_custom_call.1} parent=1 // pred_check_branch
      %47 = sbr.rel (0) target = $region17
    $region16: #{tpu_custom_call.1} parent=1 // pred_region
      %49 = dma.done [#allocation6], 64
    $region17: #{tpu_custom_call.1} parent=1 // pred_fallthru
      _
    %s50 = sadd.s32 0, 0
    %s51 = sadd.s32 0, 0
    %p52 = scmp.eq.s32.totalorder 0, 0
    // Predicated region
    $region18: #{tpu_custom_call.1} parent=1 // pred_check
      %p53 = pneg %p52
    $region19: #{tpu_custom_call.1} parent=1 // pred_check_branch
      %55 = sbr.rel (%p53) target = $region21
    $region20: #{tpu_custom_call.1} parent=1 // pred_region
      %56 = vst [vmem:[#allocation7] sm:$0x3] 0.0
      %57 = vst [vmem:[#allocation7 + $0x2] sm:$0x3] 0.0
      %58 = vst [vmem:[#allocation7 + $0x4] sm:$0x3] 0.0
      %59 = vst [vmem:[#allocation7 + $0x6] sm:$0x3] 0.0
    $region21: #{tpu_custom_call.1} parent=1 // pred_fallthru
      _
    %v60 = vld [vmem:[#allocation2] sm:$0x3]
    %v61 = vld [vmem:[#allocation2 + $0x4] sm:$0x3]
    %s62 = scalar_lea.vmem [#allocation2], 2
    %v63 = vld [vmem:[%s62] sm:$0x3]
    %v64 = vld [vmem:[%s62 + $0x4] sm:$0x3]
    %v65 = vld [vmem:[#allocation5] sm:$0x3]
    %v66 = vld [vmem:[#allocation5 + $0x2] sm:$0x3]
    %v67 = vcvt.s32.f32 %v65
    %v68 = vcvt.s32.f32 %v66
    %v69 = vsub.f32 %v63, %v60
    %v70 = vsub.f32 %v64, %v61
    %v71 = vmul.f32 %v69, 0.5
    %v72 = vmul.f32 %v70, 0.5
    %v73 = vtanh.pop %v71
    %v74 = vtanh.pop %v72
    %v75 = vadd.f32 %v73, 1.0
    %v76 = vadd.f32 %v74, 1.0
    %v77 = vmul.f32 %v75, 0.5
    %v78 = vmul.f32 %v76, 0.5
    %v79 = vmax.f32 %v77, 1.1920929e-07
    %v80 = vmax.f32 %v78, 1.1920929e-07
    %v81 = vmin.f32 %v79, 0.9999999
    %v82 = vmin.f32 %v80, 0.9999999
    %v83 = vsub.f32 1.0, %v81
    %v84 = vsub.f32 1.0, %v82
    %v85 = vsub.f32 1.0, %v67
    %v86 = vsub.f32 1.0, %v68
    %vm87 = vcmp.gt.f32.partialorder %v67, 0.5
    %vm88 = vcmp.gt.f32.partialorder %v68, 0.5
    %v89 = vsel %vm87, %v81, %v83
    %v90 = vsel %vm88, %v82, %v84
    %v91 = vlog2.pop %v89
    %v92 = vmul.f32 %v91, 0.6931472
    %v93 = vlog2.pop %v90
    %v94 = vmul.f32 %v93, 0.6931472
    %v95 = vmul.f32 %v81, %v81
    %v96 = vmul.f32 %v82, %v82
    %v97 = vmul.f32 %v81, %v95
    %v98 = vmul.f32 %v82, %v96
    %v99 = vmul.f32 %v97, 0.1
    %v100 = vmul.f32 %v98, 0.1
    %v101 = vsub.f32 0.0, %v92
    %v102 = vsub.f32 0.0, %v94
    %v103 = vmul.f32 %v99, %v85
    %v104 = vmul.f32 %v100, %v86
    %v105 = vmul.f32 %v67, 0.9
    %v106 = vmul.f32 %v68, 0.9
    %v107 = vadd.f32 %v103, %v105
    %v108 = vadd.f32 %v104, %v106
    %v109 = vmul.f32 %v101, %v107
    %v110 = vmul.f32 %v102, %v108
    %v111 = vld [vmem:[#allocation7] sm:$0x3]
    %vm112 = vcmask 1041408
    %v113 = vsel %vm112, %v67, 0.0
    %v114 = vrot.slane %v113, 4
    %v115 = vadd.f32 %v113, %v114
    %v116 = vrot.slane %v115, 2
    %v117 = vadd.f32 %v115, %v116
    %v118 = vrot.slane %v117, 1
    %v119 = vadd.f32 %v117, %v118
    %v120 = vsel %vm112, %v68, 0.0
    %v121 = vrot.slane %v120, 4
    %v122 = vadd.f32 %v120, %v121
    %v123 = vrot.slane %v122, 2
    %v124 = vadd.f32 %v122, %v123
    %v125 = vrot.slane %v124, 1
    %v126 = vadd.f32 %v124, %v125
    %vm129 = vcmask 1041409
    %v130 = vsel %vm129, %v126, %v119
    %v132 = vadd.f32 %v111, %v130
    %133 = vst [vmem:[#allocation7] sm:$0x3] %v132
    %s134 = scalar_lea.vmem [#allocation7], 2
    %v135 = vld [vmem:[%s134] sm:$0x3]
    %v136 = vmul.f32 %v85, %v83
    %v137 = vmul.f32 %v86, %v84
    %v138 = vsel %vm112, %v136, 0.0
    %v139 = vrot.slane %v138, 4
    %v140 = vadd.f32 %v138, %v139
    %v141 = vrot.slane %v140, 2
    %v142 = vadd.f32 %v140, %v141
    %v143 = vrot.slane %v142, 1
    %v144 = vadd.f32 %v142, %v143
    %v145 = vsel %vm112, %v137, 0.0
    %v146 = vrot.slane %v145, 4
    %v147 = vadd.f32 %v145, %v146
    %v148 = vrot.slane %v147, 2
    %v149 = vadd.f32 %v147, %v148
    %v150 = vrot.slane %v149, 1
    %v151 = vadd.f32 %v149, %v150
    %v154 = vsel %vm129, %v151, %v144
    %v156 = vadd.f32 %v135, %v154
    %157 = vst [vmem:[%s134] sm:$0x3] %v156
    %s158 = scalar_lea.vmem [#allocation7], 4
    %v159 = vld [vmem:[%s158] sm:$0x3]
    %v160 = vmul.f32 %v67, %v81
    %v161 = vmul.f32 %v68, %v82
    %v162 = vsel %vm112, %v160, 0.0
    %v163 = vrot.slane %v162, 4
    %v164 = vadd.f32 %v162, %v163
    %v165 = vrot.slane %v164, 2
    %v166 = vadd.f32 %v164, %v165
    %v167 = vrot.slane %v166, 1
    %v168 = vadd.f32 %v166, %v167
    %v169 = vsel %vm112, %v161, 0.0
    %v170 = vrot.slane %v169, 4
    %v171 = vadd.f32 %v169, %v170
    %v172 = vrot.slane %v171, 2
    %v173 = vadd.f32 %v171, %v172
    %v174 = vrot.slane %v173, 1
    %v175 = vadd.f32 %v173, %v174
    %v178 = vsel %vm129, %v175, %v168
    %v180 = vadd.f32 %v159, %v178
    %181 = vst [vmem:[%s158] sm:$0x3] %v180
    %s182 = scalar_lea.vmem [#allocation7], 6
    %v183 = vld [vmem:[%s182] sm:$0x3]
    %v184 = vsel %vm112, %v109, 0.0
    %v185 = vrot.slane %v184, 4
    %v186 = vadd.f32 %v184, %v185
    %v187 = vrot.slane %v186, 2
    %v188 = vadd.f32 %v186, %v187
    %v189 = vrot.slane %v188, 1
    %v190 = vadd.f32 %v188, %v189
    %v191 = vsel %vm112, %v110, 0.0
    %v192 = vrot.slane %v191, 4
    %v193 = vadd.f32 %v191, %v192
    %v194 = vrot.slane %v193, 2
    %v195 = vadd.f32 %v193, %v194
    %v196 = vrot.slane %v195, 1
    %v197 = vadd.f32 %v195, %v196
    %v200 = vsel %vm129, %v197, %v190
    %v202 = vadd.f32 %v183, %v200
    %203 = vst [vmem:[%s182] sm:$0x3] %v202
    // Predicated region
    $region22: #{tpu_custom_call.1} parent=1 // pred_check
      _
    $region23: #{tpu_custom_call.1} parent=1 // pred_check_branch
      %205 = sbr.rel (0) target = $region25
    $region24: #{tpu_custom_call.1} parent=1 // pred_region
      %207 = vsyncadd [#allocation4], 0
      %s208 = sshll.u32 [#allocation7], 4
      %s209 = int_to_ptr.vmem [resolvable:$true] %s208
      %s210 = sshll.u32 %s2, 4
      %s211 = int_to_ptr.hbm [resolvable:$true] %s210
      %216 = dma.vmem_to_hbm [thread:$0]  %s209, 128, %s211, [#allocation4], 32, 32, 2
    $region25: #{tpu_custom_call.1} parent=1 // pred_fallthru
      _
    // Predicated region
    $region26: #{tpu_custom_call.1} parent=1 // pred_check
      _
    $region27: #{tpu_custom_call.1} parent=1 // pred_check_branch
      %218 = sbr.rel (0) target = $region29
    $region28: #{tpu_custom_call.1} parent=1 // pred_region
      %220 = dma.done [#allocation4], 128
    $region29: #{tpu_custom_call.1} parent=1 // pred_fallthru
      _
    %221 = vsyncpa [#allocation3], 1
    %222 = vsyncpa [#allocation6], 1
    %223 = vsyncpa [#allocation4], 1

</llo_original>
